<compile_context>
chip_gen: v7x
topology: tpu7x:2x2x1
jax: 0.10.0
libtpu: 0.0.40
codegen_flags: <defaults>
</compile_context>

<pallas_src>
import jax
import jax.numpy as jnp
from jax.experimental import pallas as pl
from jax.experimental.pallas import tpu as pltpu  # noqa: F401  (TPU backend)


LANE = 128      # pad the batch axis to a multiple of the lane width
SUBLANE = 8     # pad the hidden axis to a multiple of the sublane count


def _mlp_kernel(xt_ref, p_ref, o_ref):
    """Fused 2-layer MLP, fully lane-dense, no MXU.

    xt_ref : (1, N_pad)          input, batch on the lane axis
    p_ref  : (3, H_pad, N_pad)   packed pre-broadcast params:
               p[0] = w1  rows (+ a zero bias-trick row)
               p[1] = b1  rows (+ a one  bias-trick row)
               p[2] = w2T rows (+ b2 in the bias-trick row)
    o_ref  : (1, N_pad)          output, batch on the lane axis
    """
    xt = xt_ref[...]                                             # (1, N_pad)

    # Layer 1 (K = n_feature = 1): VPU broadcast multiply-add + relu.
    h = jnp.maximum(p_ref[0] * xt + p_ref[1], 0.0)               # (H_pad, N_pad)

    # Layer 2 (K = n_hidden): elementwise multiply + sublane (XLU) reduce.
    # b2 is already folded in via the bias-trick row, so no extra add.
    o_ref[...] = jnp.sum(p_ref[2] * h, axis=0, keepdims=True)    # (1, N_pad)


def prepare_params(w1, b1, w2, b2, n_pad=LANE):
    """One-time re-layout of torch-style params into one packed kernel buffer.

    w1: (H, F) with F == 1 ; b1: (H,) ; w2: (O, H) with O == 1 ; b2: (O,)
    Returns packed (3, H_pad, n_pad) float32:
      section 0: w1   (row H = 0,   bias-trick)
      section 1: b1   (row H = 1,   bias-trick)
      section 2: w2^T (row H = b2,  bias-trick)
    Padding rows beyond H+1 are zero and contribute exactly nothing.
    """
    H, F = w1.shape
    O = w2.shape[0]
    assert F == 1 and O == 1, "kernel is specialized to n_feature=1, n_output=1"

    # Room for the bias-trick row, rounded up to a sublane multiple.
    h_pad = max(SUBLANE, -(-(H + 1) // SUBLANE) * SUBLANE)

    w1_c = jnp.zeros((h_pad,), jnp.float32).at[:H].set(w1.reshape(H).astype(jnp.float32))
    b1_c = (jnp.zeros((h_pad,), jnp.float32)
            .at[:H].set(b1.reshape(H).astype(jnp.float32))
            .at[H].set(1.0))
    w2t_c = (jnp.zeros((h_pad,), jnp.float32)
             .at[:H].set(w2.reshape(H).astype(jnp.float32))
             .at[H].set(b2.reshape(())[()].astype(jnp.float32)))

    ones = jnp.ones((n_pad,), jnp.float32)
    bcast = lambda col: col.reshape(h_pad, 1) * ones             # (h_pad, n_pad)

    return jnp.stack([bcast(w1_c), bcast(b1_c), bcast(w2t_c)], axis=0)


@jax.jit
def net_forward(x, packed_params):
    """x: (N, 1) float32 (PyTorch convention). packed_params from prepare_params()."""
    N = x.shape[0]
    h_pad, n_pad = packed_params.shape[-2], packed_params.shape[-1]
    assert N <= n_pad, "increase n_pad in prepare_params (or add a grid) for larger N"

    # F == 1: transpose to lane-dense (1, N) is a free reshape; pad lanes to 128
    # so the input load / output store are single unmasked dense transfers.
    xt = jnp.pad(x.reshape(1, N).astype(jnp.float32), ((0, 0), (0, n_pad - N)))

    yt = pl.pallas_call(
        _mlp_kernel,
        out_shape=jax.ShapeDtypeStruct((1, n_pad), jnp.float32),
        in_specs=[
            pl.BlockSpec((1, n_pad), lambda: (0, 0)),          # x^T, lane-dense
            pl.BlockSpec((3, h_pad, n_pad), lambda: (0, 0, 0)),  # packed params
        ],
        out_specs=pl.BlockSpec((1, n_pad), lambda: (0, 0)),    # y^T, lane-dense
    )(xt, packed_params)

    # Back to the PyTorch (N, O) convention; padded lanes are discarded.
    return yt[0, :N].reshape(N, 1)


def net_forward_ref(x, w1, b1, w2, b2):
    h = jnp.maximum(x @ w1.T + b1, 0.0)
    return h @ w2.T + b2


if __name__ == "__main__":
    # Same problem setup as the lesson1 regression demo:
    #   x = unsqueeze(linspace(-1, 1, 100), dim=1)  -> (100, 1)
    #   Net(n_feature=1, n_hidden=10, n_output=1)
    N_FEATURE, N_HIDDEN, N_OUTPUT, N_SAMPLES = 1, 10, 1, 100

    x = jnp.linspace(-1.0, 1.0, N_SAMPLES, dtype=jnp.float32).reshape(N_SAMPLES, 1)

    # Deterministic parameter init (PyTorch-Linear-style uniform +-1/sqrt(fan_in)).
    key = jax.random.PRNGKey(0)
    k1, k2, k3, k4 = jax.random.split(key, 4)
    bound1 = 1.0 / jnp.sqrt(jnp.float32(N_FEATURE))
    bound2 = 1.0 / jnp.sqrt(jnp.float32(N_HIDDEN))
    w1 = jax.random.uniform(k1, (N_HIDDEN, N_FEATURE), jnp.float32, -bound1, bound1)
    b1 = jax.random.uniform(k2, (N_HIDDEN,), jnp.float32, -bound1, bound1)
    w2 = jax.random.uniform(k3, (N_OUTPUT, N_HIDDEN), jnp.float32, -bound2, bound2)
    b2 = jax.random.uniform(k4, (N_OUTPUT,), jnp.float32, -bound2, bound2)

    # Hoisted, one-time parameter packing / re-layout (not in the per-call path).
    packed = prepare_params(w1, b1, w2, b2)

    y = net_forward(x, packed)
    y = jax.block_until_ready(y)

    y_ref = net_forward_ref(x, w1, b1, w2, b2)
    assert y.shape == (N_SAMPLES, N_OUTPUT)
    assert jnp.allclose(y, y_ref, atol=1e-5, rtol=1e-5)

    print("KERNEL_OK")
</pallas_src>

<mosaic_0001>
module attributes {stable_mosaic.version = 11 : i64} {
  func.func @_mlp_kernel(%arg0: memref<1x128xf32, #tpu.memory_space<vmem>>, %arg1: memref<3x16x128xf32, #tpu.memory_space<vmem>>, %arg2: memref<1x128xf32, #tpu.memory_space<vmem>>) attributes {dimension_semantics = [], scalar_prefetch = 0 : i64, scratch_operands = 0 : i64, tpu.core_type = #tpu.core_type<tc>} {
    %c0 = arith.constant 0 : index
    %c0_0 = arith.constant 0 : index
    %0 = vector.load %arg0[%c0, %c0_0] : memref<1x128xf32, #tpu.memory_space<vmem>>, vector<1x128xf32>
    %c0_1 = arith.constant 0 : index
    %c0_2 = arith.constant 0 : index
    %c0_3 = arith.constant 0 : index
    %1 = vector.load %arg1[%c0_1, %c0_2, %c0_3] : memref<3x16x128xf32, #tpu.memory_space<vmem>>, vector<1x16x128xf32>
    %2 = vector.shape_cast %1 : vector<1x16x128xf32> to vector<16x128xf32>
    %3 = vector.broadcast %0 : vector<1x128xf32> to vector<16x128xf32>
    %4 = arith.mulf %2, %3 : vector<16x128xf32>
    %c1 = arith.constant 1 : index
    %c0_4 = arith.constant 0 : index
    %c0_5 = arith.constant 0 : index
    %5 = vector.load %arg1[%c1, %c0_4, %c0_5] : memref<3x16x128xf32, #tpu.memory_space<vmem>>, vector<1x16x128xf32>
    %6 = vector.shape_cast %5 : vector<1x16x128xf32> to vector<16x128xf32>
    %7 = arith.addf %4, %6 : vector<16x128xf32>
    %cst = arith.constant 0.000000e+00 : f32
    %8 = vector.broadcast %cst : f32 to vector<16x128xf32>
    %9 = arith.maximumf %7, %8 : vector<16x128xf32>
    %c2 = arith.constant 2 : index
    %c0_6 = arith.constant 0 : index
    %c0_7 = arith.constant 0 : index
    %10 = vector.load %arg1[%c2, %c0_6, %c0_7] : memref<3x16x128xf32, #tpu.memory_space<vmem>>, vector<1x16x128xf32>
    %11 = vector.shape_cast %10 : vector<1x16x128xf32> to vector<16x128xf32>
    %12 = arith.mulf %11, %9 : vector<16x128xf32>
    %cst_8 = arith.constant dense<0.000000e+00> : vector<128xf32>
    %13 = vector.multi_reduction <add>, %12, %cst_8 [0] : vector<16x128xf32> to vector<128xf32>
    %14 = vector.shape_cast %13 : vector<128xf32> to vector<1x128xf32>
    %c0_9 = arith.constant 0 : index
    %c0_10 = arith.constant 0 : index
    %15 = vector.load %arg2[%c0_9, %c0_10] : memref<1x128xf32, #tpu.memory_space<vmem>>, vector<1x128xf32>
    tpu.vector_store %arg2[%c0_9, %c0_10], %14 {strides = array<i32>} : memref<1x128xf32, #tpu.memory_space<vmem>>, vector<1x128xf32>,
    return
  }
}

</mosaic_0001>

<llo_original>
// kernel: net_forward.1
$region0: #{net_forward.1}
  #allocation0 [shape = 'u32[]', space=smem, size = 0x4, offset = 0x4, fixed_abs, tag = 'smem constant byte address 0x4 - core index']
  #allocation1 [shape = 'u32[144,128]{1,0:T(1,128)}', space=vmem, size = 0x12000, scoped, tag = 'internal scratch']
  %s0 = inlined_call_operand.vmem [shape: f32[1,128], index: 0, kind: input, shape index: {}]
  %s1 = inlined_call_operand.hbm [shape: f32[3,16,128], index: 1, kind: input, shape index: {}]
  %s2 = inlined_call_operand.vmem [shape: f32[1,128], index: 2, kind: output, shape index: {}]
  %s3 = sld [smem:[#allocation0]]
  $region22: #{net_forward.1} parent=0
    _
  %s5 = ssub.s32 1, %s3
  %s6 = scalar_select 0, %s5, %s3
  $region1: #{net_forward.1} parent=0
    #allocation2 [shape = 'u8[24576]{0}', space=vmem, size = 0x6000, scoped, tag = 'input window, operand 1, single buffered']
    #allocation3 [shape = 's32[1]{0}', space=sflag, size = 0x4, scoped, tag = 'scoped memory for net_forward.1']
    %7 = vsyncpa [#allocation3], 0
    // Predicated region
    $region2: #{net_forward.1} parent=1 // pred_check
      _
    $region3: #{net_forward.1} parent=1 // pred_check_branch
      %9 = sbr.rel (0) target = $region5
    $region4: #{net_forward.1} parent=1 // pred_region
      _
    $region5: #{net_forward.1} parent=1 // pred_fallthru
      _
    // Predicated region
    $region6: #{net_forward.1} parent=1 // pred_check
      _
    $region7: #{net_forward.1} parent=1 // pred_check_branch
      %11 = sbr.rel (0) target = $region9
    $region8: #{net_forward.1} parent=1 // pred_region
      %s13 = ssub.s32 768, 768
      %14 = vsyncadd [#allocation3], %s13
      %s15 = sshll.u32 [#allocation2], 4
      %s16 = int_to_ptr.vmem [resolvable:$true] %s15
      %21 = dma.hbm_to_vmem [thread:$0]  %s1, 768, %s16, [#allocation3], 128, 128, 8
    $region9: #{net_forward.1} parent=1 // pred_fallthru
      _
    // Predicated region
    $region10: #{net_forward.1} parent=1 // pred_check
      _
    $region11: #{net_forward.1} parent=1 // pred_check_branch
      %23 = sbr.rel (0) target = $region13
    $region12: #{net_forward.1} parent=1 // pred_region
      %24 = dma.done [#allocation3], 768
    $region13: #{net_forward.1} parent=1 // pred_fallthru
      _
    %v25 = vld [vmem:[%s0] sm:$0x1]
    %v26 = vld [vmem:[#allocation2] sm:$0xff]
    %v27 = vld [vmem:[#allocation2 + $0x8] sm:$0xff]
    %v29 = vlaneseq
    %v30 = vshrl.u32 %v29, 7
    %v31 = vsub.s32 0, %v30
    %v32 = vrot.slane %v25, %v31
    %v34 = vmul.f32 %v26, %v32
    %v35 = vmul.f32 %v27, %v32
    %s36 = scalar_lea.vmem [#allocation2], 16
    %v37 = vld [vmem:[%s36] sm:$0xff]
    %v38 = vld [vmem:[%s36 + $0x8] sm:$0xff]
    %v39 = vadd.f32 %v34, %v37
    %v40 = vadd.f32 %v35, %v38
    %v41 = vmax.f32 %v39, 0.0
    %v42 = vmax.f32 %v40, 0.0
    %s43 = scalar_lea.vmem [#allocation2], 32
    %v44 = vld [vmem:[%s43] sm:$0xff]
    %v45 = vld [vmem:[%s43 + $0x8] sm:$0xff]
    %v46 = vmul.f32 %v44, %v41
    %v47 = vmul.f32 %v45, %v42
    %v48 = vadd.f32 %v46, %v47
    %v49 = vrot.slane %v48, 4
    %v50 = vadd.f32 %v48, %v49
    %v51 = vrot.slane %v50, 2
    %v52 = vadd.f32 %v50, %v51
    %v53 = vrot.slane %v52, 1
    %v54 = vadd.f32 %v52, %v53
    %55 = vst [vmem:[%s2] sm:$0x1] %v54
    // Predicated region
    $region14: #{net_forward.1} parent=1 // pred_check
      _
    $region15: #{net_forward.1} parent=1 // pred_check_branch
      %57 = sbr.rel (0) target = $region17
    $region16: #{net_forward.1} parent=1 // pred_region
      _
    $region17: #{net_forward.1} parent=1 // pred_fallthru
      _
    // Predicated region
    $region18: #{net_forward.1} parent=1 // pred_check
      _
    $region19: #{net_forward.1} parent=1 // pred_check_branch
      %59 = sbr.rel (0) target = $region21
    $region20: #{net_forward.1} parent=1 // pred_region
      _
    $region21: #{net_forward.1} parent=1 // pred_fallthru
      _
    %60 = vsyncpa [#allocation3], 1

</llo_original>
